<compile_context>
chip_gen: v5e
topology: v5e:2x2
jax: 0.10.0
libtpu: 0.0.40
codegen_flags: <defaults>
</compile_context>

<pallas_src>
import functools

import numpy as np
import jax
import jax.numpy as jnp
from jax.experimental import pallas as pl
from jax.experimental.pallas import tpu as pltpu


# ------------------------------- tiling helpers ------------------------------

def _pad_to(n, m):
    return ((n + m - 1) // m) * m


def _mm_tiles(M, K, N):
    """Tile sizes / padded dims for (M,K)@(K,N).  Kp/Np depend only on K/N so
    weights can be pre-padded at init with a dummy M."""
    Mp = _pad_to(max(M, 1), 16)                  # bf16 sublane packing -> mult of 16
    if Mp <= 256:
        tm = Mp
    else:
        tm = 256
        Mp = _pad_to(Mp, 256)

    # Skinny-M weight-streaming GEMMs (fc1/fc2) can afford bigger K tiles: fewer grid
    # steps on an HBM-bound stream.  Big-M message GEMMs keep tk<=4096 for v7x VMEM.
    k_cap = 8192 if Mp <= 16 else 4096
    Kp = _pad_to(max(K, 1), 128)
    if Kp <= k_cap:
        tk = Kp
    else:
        tk = None
        for d in range(2, 257):                  # largest divisor tile <= k_cap
            if Kp % d == 0 and (Kp // d) % 128 == 0 and Kp // d <= k_cap:
                tk = Kp // d
                break
        if tk is None:
            tk = 2048
            Kp = _pad_to(Kp, tk)

    Np = _pad_to(max(N, 1), 128)
    if Np <= 256:
        tn = Np
    elif Np == 512:
        # single-M-block GEMMs: 2 N-blocks so both v7x TensorCores get work
        tn = 256 if Mp <= 256 else 512
    elif Np % 512 == 0:
        tn = 512                                 # fc1 -> 2 N-blocks
    elif Np % 256 == 0:
        tn = 256
    else:
        tn = 128
    return tm, tk, tn, Mp, Kp, Np


class PreparedWeight:
    """Weight padded to tile-aligned shape ONCE at init.
    quantize=False: bf16 storage.  quantize=True: int8 storage + per-column f32 scale
    (weight-only quant; dequantized to bf16 in-kernel, scale applied in epilogue)."""

    def __init__(self, w, quantize=False):
        w = jnp.asarray(w, jnp.float32)
        self.k, self.n = int(w.shape[0]), int(w.shape[1])
        _, _, _, _, Kp, Np = _mm_tiles(16, self.k, self.n)
        self.quantized = bool(quantize)
        if quantize:
            absmax = jnp.max(jnp.abs(w), axis=0)                       # (n,)
            scale = jnp.maximum(absmax, 1e-12) / 127.0
            q = jnp.clip(jnp.round(w / scale[None, :]), -127, 127).astype(jnp.int8)
            self.data = q if (self.k, self.n) == (Kp, Np) else jnp.pad(
                q, ((0, Kp - self.k), (0, Np - self.n)))
            self.wscale = scale                                        # (n,) f32
        else:
            wb = w.astype(jnp.bfloat16)
            self.data = wb if (self.k, self.n) == (Kp, Np) else jnp.pad(
                wb, ((0, Kp - self.k), (0, Np - self.n)))
            self.wscale = None


# ------------------------------- Pallas kernels -------------------------------

def _elu(y):
    # ELU(alpha=1).  exp(min(y,0))-1 is a single EUP op, accurate enough for f32
    # inference, and never produces inf/nan in the unselected where branch.
    return jnp.where(y > 0.0, y, jnp.exp(jnp.minimum(y, 0.0)) - 1.0)


def _epilogue(acc, meta, add, apply_elu, dequant):
    # meta rows: 0=bias, 1=bn_scale, 2=bn_shift, 3=weight dequant scale
    y = acc * meta[3:4, :] + meta[0:1, :] if dequant else acc + meta[0:1, :]
    if add is not None:
        y = y + add
    if apply_elu:
        y = _elu(y)
    return y * meta[1:2, :] + meta[2:3, :]


def _mm_kernel(a_ref, b_ref, meta_ref, o_ref, acc_ref, *, apply_elu, dequant):
    @pl.when(pl.program_id(2) == 0)
    def _():
        acc_ref[...] = jnp.zeros_like(acc_ref)

    b = b_ref[...]
    if dequant:
        b = b.astype(jnp.float32).astype(jnp.bfloat16)   # int8 -> bf16 (exact ints)
    acc_ref[...] += jnp.dot(a_ref[...], b, preferred_element_type=jnp.float32)

    @pl.when(pl.program_id(2) == pl.num_programs(2) - 1)
    def _():
        y = _epilogue(acc_ref[...], meta_ref[...], None, apply_elu, dequant)
        o_ref[...] = y.astype(o_ref.dtype)


def _mm_add_kernel(a_ref, b_ref, meta_ref, add_ref, o_ref, acc_ref,
                   *, apply_elu, dequant):
    @pl.when(pl.program_id(2) == 0)
    def _():
        acc_ref[...] = jnp.zeros_like(acc_ref)

    b = b_ref[...]
    if dequant:
        b = b.astype(jnp.float32).astype(jnp.bfloat16)
    acc_ref[...] += jnp.dot(a_ref[...], b, preferred_element_type=jnp.float32)

    @pl.when(pl.program_id(2) == pl.num_programs(2) - 1)
    def _():
        y = _epilogue(acc_ref[...], meta_ref[...], add_ref[...], apply_elu, dequant)
        o_ref[...] = y.astype(o_ref.dtype)


def pallas_matmul(a, b, bias=None, addend=None, apply_elu=False,
                  scale=None, shift=None, out_dtype=jnp.float32):
    """epilogue(a @ b * wscale + bias [+ addend]) with bf16 MXU inputs, f32 acc.
    epilogue = (optional ELU) then per-column scale/shift (folded eval BatchNorm)."""
    if not isinstance(b, PreparedWeight):
        b = PreparedWeight(b)
    a = jnp.asarray(a)
    M, K = a.shape
    assert K == b.k, (K, b.k)
    N = b.n
    tm, tk, tn, Mp, Kp, Np = _mm_tiles(M, K, N)
    assert b.data.shape == (Kp, Np)

    if a.dtype != jnp.bfloat16:
        a = a.astype(jnp.bfloat16)
    if (M, K) != (Mp, Kp):                      # skip pad copy when already aligned
        a = jnp.pad(a, ((0, Mp - M), (0, Kp - K)))

    def row(v, default):
        if v is None:
            return jnp.full((Np,), default, jnp.float32)
        v = jnp.asarray(v, jnp.float32).reshape(-1)
        return v if v.shape[0] == Np else jnp.pad(v, (0, Np - N))

    # bias / BN scale / BN shift / weight-dequant scale packed into one (8, Np) block
    meta = jnp.pad(jnp.stack([row(bias, 0.0), row(scale, 1.0), row(shift, 0.0),
                              row(b.wscale, 1.0)], axis=0), ((0, 4), (0, 0)))

    operands = [a, b.data, meta]
    in_specs = [
        pl.BlockSpec((tm, tk), lambda i, j, k: (i, k)),
        pl.BlockSpec((tk, tn), lambda i, j, k: (k, j)),
        pl.BlockSpec((8, tn), lambda i, j, k: (0, j)),
    ]
    if addend is None:
        kernel = functools.partial(_mm_kernel, apply_elu=apply_elu,
                                   dequant=b.quantized)
    else:
        add = jnp.asarray(addend, jnp.float32)
        if add.shape != (Mp, Np):
            add = jnp.pad(add, ((0, Mp - add.shape[0]), (0, Np - add.shape[1])))
        operands.append(add)
        in_specs.append(pl.BlockSpec((tm, tn), lambda i, j, k: (i, j)))
        kernel = functools.partial(_mm_add_kernel, apply_elu=apply_elu,
                                   dequant=b.quantized)

    out = pl.pallas_call(
        kernel,
        out_shape=jax.ShapeDtypeStruct((Mp, Np), out_dtype),
        grid_spec=pltpu.PrefetchScalarGridSpec(
            num_scalar_prefetch=0,
            grid=(Mp // tm, Np // tn, Kp // tk),
            in_specs=in_specs,
            out_specs=pl.BlockSpec((tm, tn), lambda i, j, k: (i, j)),
            scratch_shapes=[pltpu.VMEM((tm, tn), jnp.float32)],
        ),
        compiler_params=pltpu.CompilerParams(
            dimension_semantics=("parallel", "parallel", "arbitrary"),
            vmem_limit_bytes=48 * 1024 * 1024),
    )(*operands)
    return out[:M, :N]


# ----------------------- host-side graph bookkeeping --------------------------
# TODO(synk): voxel-grid clustering, consecutive relabeling and edge coalescing are
# data-dependent (np.unique / dynamic shapes) with no clean Pallas equivalent; they
# run on host in NumPy.  The dense scatters (max over clusters, mean aggregation)
# run on device via jax.ops.segment_*.

def cartesian(pos, edge_index):
    """torch_geometric.transforms.Cartesian(cat=False, norm=True)."""
    row, col = edge_index
    cart = pos[row] - pos[col]
    if cart.size:
        max_v = np.abs(cart).max()
        max_v = max_v if max_v > 0 else 1.0
        cart = cart / (2.0 * max_v) + 0.5
    return cart.astype(np.float32)


def voxel_grid(pos, batch, size):
    """torch_geometric.nn.voxel_grid (batch appended as slowest grid dim)."""
    start = pos.min(0)
    end = pos.max(0)
    num = np.floor((end - start) / size).astype(np.int64) + 1
    c = np.floor((pos - start) / size).astype(np.int64)
    c = np.minimum(c, num - 1)
    n_vox = int(num[0] * num[1] * num[2])
    cluster = (c[:, 0] + c[:, 1] * num[0] + c[:, 2] * num[0] * num[1]
               + batch.astype(np.int64) * n_vox)
    return cluster


def max_pool_graph(cluster, x_dev, pos, batch, edge_index):
    """torch_geometric.nn.max_pool(cluster, data, transform=T.Cartesian(cat=False)).
    Node features stay on device (segment_max, bf16); pos/batch/edges on host."""
    uniq, inv = np.unique(cluster, return_inverse=True)
    nc = uniq.shape[0]
    # node features: scatter max (device) — every cluster has >=1 node
    x_new = jax.ops.segment_max(jnp.asarray(x_dev),
                                jnp.asarray(inv, jnp.int32), num_segments=nc)
    # positions: scatter mean (host, tiny)
    pos_new = np.zeros((nc, pos.shape[1]), np.float64)
    cnt = np.zeros((nc,), np.float64)
    np.add.at(pos_new, inv, pos.astype(np.float64))
    np.add.at(cnt, inv, 1.0)
    pos_new = (pos_new / cnt[:, None]).astype(np.float32)
    # batch per cluster
    batch_new = np.zeros((nc,), np.int64)
    batch_new[inv] = batch
    # edges: remap, remove self loops, coalesce (dedup)
    r, c = inv[edge_index[0]], inv[edge_index[1]]
    mask = r != c
    r, c = r[mask], c[mask]
    key = np.unique(r.astype(np.int64) * nc + c.astype(np.int64))
    ei_new = np.stack([key // nc, key % nc], axis=0)
    ea_new = cartesian(pos_new, ei_new)
    return x_new, pos_new, batch_new, ei_new, ea_new


def max_pool_x_size(cluster, x_dev, batch, size):
    """torch_geometric.nn.max_pool_x(cluster, x, batch, size=size): raw-cluster scatter
    into batch_size*size rows (same semantics as PyG; empty rows are 0)."""
    batch_size = int(batch.max()) + 1
    ns = batch_size * size
    # PyTorch's scatter would error on out-of-range cluster ids; mirror that bound
    # explicitly instead of silently dropping rows (review correctness concern).
    assert int(np.max(cluster)) < ns, (int(np.max(cluster)), ns)
    cid = jnp.asarray(cluster, jnp.int32)
    x_dev = jnp.asarray(x_dev)
    out = jax.ops.segment_max(x_dev, cid, num_segments=ns)
    cnt = jax.ops.segment_sum(jnp.ones((x_dev.shape[0],), jnp.float32), cid,
                              num_segments=ns)
    return jnp.where(cnt[:, None] > 0, out, jnp.zeros((), out.dtype))


# --------------------------------- SplineConv ---------------------------------

def spline_coeff(pseudo, kernel_size=3):
    """Open B-spline basis, degree 1, dim=3, kernel_size=3 -> dense (E, 27) coeffs."""
    E, d = pseudo.shape
    v = jnp.clip(jnp.asarray(pseudo, jnp.float32), 0.0, 1.0) * (kernel_size - 1)
    lo = jnp.minimum(jnp.floor(v), float(kernel_size - 2)).astype(jnp.int32)
    frac = v - lo.astype(jnp.float32)
    S = 1 << d
    Kk = kernel_size ** d
    basis = jnp.ones((E, S), jnp.float32)
    widx = jnp.zeros((E, S), jnp.int32)
    stride = 1
    for dd in range(d):
        bit = ((jnp.arange(S, dtype=jnp.int32) >> dd) & 1)[None, :]
        basis = basis * jnp.where(bit == 1, frac[:, dd:dd + 1], 1.0 - frac[:, dd:dd + 1])
        widx = widx + (lo[:, dd:dd + 1] + bit) * stride
        stride *= kernel_size
    onehot = jax.nn.one_hot(widx, Kk, dtype=jnp.float32)        # (E, 8, 27)
    return jnp.sum(basis[:, :, None] * onehot, axis=1)          # (E, 27)


def spline_conv(x, edge_index, edge_attr, w_flat, root, bias, bn_scale, bn_shift):
    """SplineConv(dim=3, kernel_size=3, degree=1, aggr='mean', root_weight=True)
    fused with ELU + eval-mode BatchNorm in the root-matmul epilogue.
    Order matches the PyTorch reference: BN(ELU(conv_out))."""
    x = jnp.asarray(x)
    if x.dtype != jnp.bfloat16:
        x = x.astype(jnp.bfloat16)
    N, cin = x.shape
    ei = jnp.asarray(edge_index, jnp.int32)
    src, dst = ei[0], ei[1]
    pseudo = jnp.asarray(edge_attr, jnp.float32)
    E = pseudo.shape[0]

    # TODO(synk): the x[src] gather and the (E, 27*Cin) outer product could be fused
    # into the message GEMM via scalar-prefetched edge indices (pl.Element row gather);
    # kept as XLA ops here, but built directly in bf16 to halve their HBM traffic.
    coeff = spline_coeff(pseudo).astype(jnp.bfloat16)              # (E, 27)
    x_src = jnp.take(x, src, axis=0)                               # (E, Cin) bf16
    Y = (coeff[:, :, None] * x_src[:, None, :]).reshape(E, 27 * cin)   # bf16

    msg = pallas_matmul(Y, w_flat)                                 # (E, Cout) f32

    # mean aggregation over incoming edges (device scatter-add)
    agg = jax.ops.segment_sum(msg, dst, num_segments=N)
    deg = jax.ops.segment_sum(jnp.ones((E,), jnp.float32), dst, num_segments=N)
    agg = agg / jnp.maximum(deg, 1.0)[:, None]

    # root transform + bias + aggregated messages + ELU + BN, fused in the epilogue
    return pallas_matmul(x, root, bias=bias, addend=agg, apply_elu=True,
                         scale=bn_scale, shift=bn_shift, out_dtype=jnp.bfloat16)


# ----------------------------------- model ------------------------------------

def init_params(key):
    ks = jax.random.split(key, 12)
    K = 27
    eps = 1e-5

    def nrm(k, shape, fan_in):
        return (jax.random.normal(k, shape, jnp.float32) / np.sqrt(fan_in)).astype(
            jnp.float32)

    p = {}
    dims = [(1, 64), (64, 128), (128, 256), (256, 512)]
    i = 0
    for li, (cin, cout) in enumerate(dims, start=1):
        p[f'conv{li}_wflat'] = PreparedWeight(nrm(ks[i], (K * cin, cout), K * cin)); i += 1
        p[f'conv{li}_root'] = PreparedWeight(nrm(ks[i], (cin, cout), cin)); i += 1
        p[f'conv{li}_b'] = jnp.zeros((cout,), jnp.float32)
        # eval-mode BatchNorm folded to per-channel scale/shift (gamma=1, beta=0,
        # running_mean=0, running_var=1)
        gamma = jnp.ones((cout,), jnp.float32)
        beta = jnp.zeros((cout,), jnp.float32)
        mean = jnp.zeros((cout,), jnp.float32)
        var = jnp.ones((cout,), jnp.float32)
        scale = gamma / jnp.sqrt(var + eps)
        p[f'bn{li}_scale'] = scale
        p[f'bn{li}_shift'] = beta - mean * scale
    # fc1 (32768 x 1024) is purely weight-bandwidth bound -> 8-bit weight-only quant
    p['fc1_w'] = PreparedWeight(nrm(ks[i], (64 * 512, 1024), 64 * 512), quantize=True); i += 1
    p['fc1_b'] = jnp.zeros((1024,), jnp.float32)
    p['fc2_w'] = PreparedWeight(nrm(ks[i], (1024, 2), 1024)); i += 1
    p['fc2_b'] = jnp.zeros((2,), jnp.float32)
    return p


def forward(params, x, pos, batch, edge_index, edge_attr):
    x = spline_conv(x, edge_index, edge_attr,
                    params['conv1_wflat'], params['conv1_root'], params['conv1_b'],
                    params['bn1_scale'], params['bn1_shift'])

    for li, vsize in ((2, 0.05), (3, 0.1), (4, 0.15)):
        cluster = voxel_grid(pos, batch, vsize)
        x, pos, batch, edge_index, edge_attr = max_pool_graph(
            cluster, x, pos, batch, edge_index)
        x = spline_conv(x, edge_index, edge_attr,
                        params[f'conv{li}_wflat'], params[f'conv{li}_root'],
                        params[f'conv{li}_b'],
                        params[f'bn{li}_scale'], params[f'bn{li}_shift'])

    cluster = voxel_grid(pos, batch, 0.25)
    xp = max_pool_x_size(cluster, x, batch, 64)                 # (B*64, 512) bf16
    xf = xp.reshape(-1, 64 * 512)                               # (B, 32768) bf16

    # fc1 + ELU fused in epilogue (int8 weight stream, tk=8192, tn=512 -> 8 grid steps)
    h = pallas_matmul(xf, params['fc1_w'], bias=params['fc1_b'],
                      apply_elu=True, out_dtype=jnp.bfloat16)
    # TODO(synk): F.dropout is identity in eval mode; training-mode RNG not reproduced.
    out = pallas_matmul(h, params['fc2_w'], bias=params['fc2_b'])   # (B, 2) f32
    return out


# ------------------------------------ main -------------------------------------

if __name__ == "__main__":
    key = jax.random.PRNGKey(0)
    k_pos, k_x, k_src, k_off, k_par = jax.random.split(key, 5)

    n_graphs, n_per, e_per = 2, 100, 300
    N, E = n_graphs * n_per, n_graphs * e_per

    # pos in [0, ~0.98): voxel_grid(size=0.25) then yields <= 4^3 = 64 voxels/graph,
    # so raw cluster ids stay inside the B*64 rows max_pool_x(size=64) scatters into
    # (mirrors the PyG usage where positions are normalized to [0, 1)).
    pos = np.asarray(jax.random.uniform(k_pos, (N, 3), jnp.float32)) * 0.98
    x0 = np.asarray(jax.random.normal(k_x, (N, 1), jnp.float32))
    batch = np.repeat(np.arange(n_graphs), n_per).astype(np.int64)

    src = np.asarray(jax.random.randint(k_src, (E,), 0, n_per))
    off = np.asarray(jax.random.randint(k_off, (E,), 1, n_per))
    dst = (src + off) % n_per
    g_off = np.repeat(np.arange(n_graphs) * n_per, e_per)
    edge_index = np.stack([src + g_off, dst + g_off], axis=0).astype(np.int64)
    edge_attr = cartesian(pos, edge_index)     # initial pseudo-coords in [0, 1]^3

    params = init_params(k_par)

    out = forward(params, x0, pos, batch, edge_index, edge_attr)
    out = jax.block_until_ready(out)
    assert out.shape == (n_graphs, 2) and np.all(np.isfinite(np.asarray(out)))
    print("KERNEL_OK")
</pallas_src>

<mosaic_0001>
module attributes {stable_mosaic.version = 11 : i64} {
  func.func @_mm_kernel(%arg0: i32, %arg1: i32, %arg2: i32, %arg3: memref<256x128xbf16, #tpu.memory_space<vmem>>, %arg4: memref<128x128xbf16, #tpu.memory_space<vmem>>, %arg5: memref<8x128xf32, #tpu.memory_space<vmem>>, %arg6: memref<256x128xf32, #tpu.memory_space<vmem>>, %arg7: memref<256x128xf32, #tpu.memory_space<vmem>>) attributes {dimension_semantics = [#tpu.dimension_semantics<parallel>, #tpu.dimension_semantics<parallel>, #tpu.dimension_semantics<arbitrary>], iteration_bounds = array<i64: 3, 1, 1>, scalar_prefetch = 0 : i64, scratch_operands = 1 : i64, tpu.core_type = #tpu.core_type<tc>, window_params = [{transform_indices = @transform_0, window_bounds = array<i64: 256, 128>}, {transform_indices = @transform_1, window_bounds = array<i64: 128, 128>}, {transform_indices = @transform_2, window_bounds = array<i64: 8, 128>}, {transform_indices = @transform_3, window_bounds = array<i64: 256, 128>}]} {
    %c0_i32 = arith.constant 0 : i32
    %0 = arith.cmpi eq, %arg2, %c0_i32 : i32
    %1 = arith.extui %0 : i1 to i32
    %c0_i32_0 = arith.constant 0 : i32
    %2 = arith.cmpi ne, %1, %c0_i32_0 : i32
    scf.if %2 {
      %cst_10 = arith.constant 0.000000e+00 : f32
      %12 = vector.broadcast %cst_10 : f32 to vector<256x128xf32>
      %c0_11 = arith.constant 0 : index
      %c0_12 = arith.constant 0 : index
      %13 = vector.load %arg7[%c0_11, %c0_12] : memref<256x128xf32, #tpu.memory_space<vmem>>, vector<256x128xf32>
      tpu.vector_store %arg7[%c0_11, %c0_12], %12 {strides = array<i32>} : memref<256x128xf32, #tpu.memory_space<vmem>>, vector<256x128xf32>,
    } else {
    }
    %c0 = arith.constant 0 : index
    %c0_1 = arith.constant 0 : index
    %3 = vector.load %arg4[%c0, %c0_1] : memref<128x128xbf16, #tpu.memory_space<vmem>>, vector<128x128xbf16>
    %c0_2 = arith.constant 0 : index
    %c0_3 = arith.constant 0 : index
    %4 = vector.load %arg7[%c0_2, %c0_3] : memref<256x128xf32, #tpu.memory_space<vmem>>, vector<256x128xf32>
    %c0_4 = arith.constant 0 : index
    %c0_5 = arith.constant 0 : index
    %5 = vector.load %arg3[%c0_4, %c0_5] : memref<256x128xbf16, #tpu.memory_space<vmem>>, vector<256x128xbf16>
    %cst = arith.constant dense<0.000000e+00> : vector<256x128xf32>
    %6 = tpu.matmul %5, %3, %cst {dimension_numbers = #tpu.dot_dimension_numbers<[1], [0], [0], [1], [0, 0, 1, 1], [], []>} : vector<256x128xbf16>, vector<128x128xbf16>, vector<256x128xf32> -> vector<256x128xf32>
    %7 = arith.addf %4, %6 : vector<256x128xf32>
    %c0_6 = arith.constant 0 : index
    %c0_7 = arith.constant 0 : index
    %8 = vector.load %arg7[%c0_6, %c0_7] : memref<256x128xf32, #tpu.memory_space<vmem>>, vector<256x128xf32>
    tpu.vector_store %arg7[%c0_6, %c0_7], %7 {strides = array<i32>} : memref<256x128xf32, #tpu.memory_space<vmem>>, vector<256x128xf32>,
    %c0_i32_8 = arith.constant 0 : i32
    %9 = arith.cmpi eq, %arg2, %c0_i32_8 : i32
    %10 = arith.extui %9 : i1 to i32
    %c0_i32_9 = arith.constant 0 : i32
    %11 = arith.cmpi ne, %10, %c0_i32_9 : i32
    scf.if %11 {
      %c0_10 = arith.constant 0 : index
      %c0_11 = arith.constant 0 : index
      %12 = vector.load %arg7[%c0_10, %c0_11] : memref<256x128xf32, #tpu.memory_space<vmem>>, vector<256x128xf32>
      %c0_12 = arith.constant 0 : index
      %c0_13 = arith.constant 0 : index
      %13 = vector.load %arg5[%c0_12, %c0_13] : memref<8x128xf32, #tpu.memory_space<vmem>>, vector<8x128xf32>
      %14 = vector.extract_strided_slice %13 {offsets = [0, 0], sizes = [1, 128], strides = [1, 1]} : vector<8x128xf32> to vector<1x128xf32>
      %15 = vector.broadcast %14 : vector<1x128xf32> to vector<256x128xf32>
      %16 = arith.addf %12, %15 : vector<256x128xf32>
      %17 = vector.extract_strided_slice %13 {offsets = [1, 0], sizes = [1, 128], strides = [1, 1]} : vector<8x128xf32> to vector<1x128xf32>
      %18 = vector.broadcast %17 : vector<1x128xf32> to vector<256x128xf32>
      %19 = arith.mulf %16, %18 : vector<256x128xf32>
      %20 = vector.extract_strided_slice %13 {offsets = [2, 0], sizes = [1, 128], strides = [1, 1]} : vector<8x128xf32> to vector<1x128xf32>
      %21 = vector.broadcast %20 : vector<1x128xf32> to vector<256x128xf32>
      %22 = arith.addf %19, %21 : vector<256x128xf32>
      %c0_14 = arith.constant 0 : index
      %c0_15 = arith.constant 0 : index
      %23 = vector.load %arg6[%c0_14, %c0_15] : memref<256x128xf32, #tpu.memory_space<vmem>>, vector<256x128xf32>
      tpu.vector_store %arg6[%c0_14, %c0_15], %22 {strides = array<i32>} : memref<256x128xf32, #tpu.memory_space<vmem>>, vector<256x128xf32>,
    } else {
    }
    return
  }
  func.func @transform_0(%arg0: i32, %arg1: i32, %arg2: i32) -> (i32, i32) {
    %c0_i32 = arith.constant 0 : i32
    return %arg0, %arg2 : i32, i32
  }
  func.func @transform_1(%arg0: i32, %arg1: i32, %arg2: i32) -> (i32, i32) {
    %c0_i32 = arith.constant 0 : i32
    return %arg2, %arg1 : i32, i32
  }
  func.func @transform_2(%arg0: i32, %arg1: i32, %arg2: i32) -> (i32, i32) {
    %c0_i32 = arith.constant 0 : i32
    %c0_i32_0 = arith.constant 0 : i32
    return %c0_i32, %arg1 : i32, i32
  }
  func.func @transform_3(%arg0: i32, %arg1: i32, %arg2: i32) -> (i32, i32) {
    %c0_i32 = arith.constant 0 : i32
    return %arg0, %arg1 : i32, i32
  }
}

</mosaic_0001>

<llo_original>
// kernel: tpu_custom_call.1
$region0: #{tpu_custom_call.1}
  #allocation0 [shape = 'u32[]', space=smem, size = 0x4, offset = 0x4, fixed_abs, tag = 'smem constant byte address 0x4 - core index']
  #allocation1 [shape = 'u32[72,128]{1,0:T(1,128)}', space=vmem, size = 0x9000, scoped, tag = 'internal scratch']
  #allocation2 [shape = 'f32[256,128]{1,0:T(8,128)}', space=vmem, size = 0x20000, scoped, tag = 'scratch operand']
  %s0 = inlined_call_operand.hbm [shape: bf16[768,128], index: 0, kind: input, shape index: {}]
  %s1 = inlined_call_operand.hbm [shape: bf16[128,128], index: 1, kind: input, shape index: {}]
  %s2 = inlined_call_operand.hbm [shape: f32[8,128], index: 2, kind: input, shape index: {}]
  %s3 = inlined_call_operand.hbm [shape: f32[768,128], index: 3, kind: output, shape index: {}]
  %s4 = sld [smem:[#allocation0]]
  $region65: #{tpu_custom_call.1} parent=0
    _
  %s6 = ssub.s32 1, %s4
  %s7 = scalar_select 0, %s6, %s4
  $region1: #{tpu_custom_call.1} parent=0
    #allocation3 [shape = 'u8[131072]{0}', space=vmem, size = 0x20000, scoped, tag = 'input window, operand 0']
    #allocation4 [shape = 's32[2]{0}', space=sflag, size = 0x8, scoped, tag = 'scoped memory for tpu_custom_call.1']
    #allocation5 [shape = 's32[2]{0}', space=sflag, size = 0x8, scoped, tag = 'scoped memory for tpu_custom_call.1']
    #allocation6 [shape = 'u8[32768]{0}', space=vmem, size = 0x8000, scoped, tag = 'input window, operand 1, single buffered']
    #allocation7 [shape = 's32[1]{0}', space=sflag, size = 0x4, scoped, tag = 'scoped memory for tpu_custom_call.1']
    #allocation8 [shape = 'u8[4096]{0}', space=vmem, size = 0x1000, scoped, tag = 'input window, operand 2, single buffered']
    #allocation9 [shape = 'u8[262144]{0}', space=vmem, size = 0x40000, scoped, tag = 'output window, operand 0']
    %8 = vsyncpa [#allocation4], 0
    %s9 = scalar_lea.sflag [#allocation4], 1
    %10 = vsyncpa %s9, 0
    %11 = vsyncpa [#allocation7], 0
    %12 = vsyncpa [#allocation5], 0
    %s13 = scalar_lea.sflag [#allocation5], 1
    %14 = vsyncpa %s13, 0
    loop: start=0, step=1, limit=5
    $region2: #{tpu_custom_call.1} parent=1 // loop_pre_header
      _
    $region3: #{tpu_custom_call.1} parent=1 // loop_header
      %s16 = sphi 0, %s20
      %p17 = scmp.ge.s32.totalorder %s16, 5
      %s23 = sphi 0, %s42
      %s24 = sphi 0, %s38
      %s25 = sphi 0, %s34
      %s26 = sphi 0, %s23
      %s27 = sphi 0, %s24
      %s28 = sphi 0, %s25
      %s29 = sphi 0, %s26
      %s30 = sphi 0, %s27
      %s31 = sphi 0, %s28
      %s47 = sphi 0, %s49
      %s50 = sphi 0, %s47
      %s51 = sphi 0, %s50
      %s67 = sphi 0, %s51
      %s75 = sphi 0, %s77
      %s78 = sphi 0, %s75
      %s79 = sphi 0, %s78
      %s95 = sphi 0, %s79
      %s101 = sphi 0, %s103
      %s104 = sphi 0, %s101
      %s105 = sphi 0, %s104
      %s121 = sphi 0, %s105
      %s129 = sphi 0, %s131
      %s132 = sphi 0, %s129
      %s133 = sphi 0, %s132
      %s149 = sphi 0, %s133
    $region4: #{tpu_custom_call.1} parent=1 // loop_header_branch
      %19 = sbr.rel (%p17) target = $region8
    $region5: #{tpu_custom_call.1} parent=1 // loop_body
      %s21 = ssub.s32 %s16, 1
      %s22 = ssub.s32 %s16, 2
      %s32 = sadd.s32 1, %s25
      %p33 = scmp.ge.s32.totalorder %s32, 1
      %s34 = scalar_select %p33, 0, %s32
      %s35 = sadd.s32 1, %s24
      %s36 = scalar_select %p33, %s35, %s24
      %p37 = scmp.ge.s32.totalorder %s36, 1
      %s38 = scalar_select %p37, 0, %s36
      %s39 = sadd.s32 1, %s23
      %s40 = scalar_select %p37, %s39, %s23
      %p41 = scmp.ge.s32.totalorder %s40, 3
      %s42 = scalar_select %p41, 0, %s40
      %s43 = ssub.s32 %s23, %s42
      %s44 = ssub.s32 %s25, %s34
      %s45 = sor.u32 %s43, %s44
      %p46 = scmp.eq.s32.totalorder %s45, 0
      %s48 = sadd.s32 %s47, 1
      %s49 = scalar_select %p46, %s47, %s48
      %p52 = pneg %p46
      %p53 = scmp.eq.s32.totalorder %s16, 2
      %p54 = por %p52, %p53
      %p55 = scmp.ne.s32.totalorder %s47, %s50
      %p56 = scmp.eq.s32.totalorder %s16, 0
      %p57 = por %p55, %p56
      %p58 = scmp.ne.s32.totalorder %s47, %s50
      %p59 = scmp.eq.s32.totalorder %s21, 2
      %p60 = por %p58, %p59
      %p61 = scmp.ne.s32.totalorder %s50, %s51
      %p62 = scmp.eq.s32.totalorder %s21, 0
      %p63 = por %p61, %p62
      %p64 = scmp.ne.s32.totalorder %s50, %s51
      %p65 = scmp.eq.s32.totalorder %s22, 2
      %p66 = por %p64, %p65
      %p68 = scmp.ne.s32.totalorder %s51, %s67
      %p69 = scmp.eq.s32.totalorder %s22, 0
      %p70 = por %p68, %p69
      %s71 = ssub.s32 %s25, %s34
      %s72 = ssub.s32 %s24, %s38
      %s73 = sor.u32 %s71, %s72
      %p74 = scmp.eq.s32.totalorder %s73, 0
      %s76 = sadd.s32 %s75, 1
      %s77 = scalar_select %p74, %s75, %s76
      %p80 = pneg %p74
      %p81 = scmp.eq.s32.totalorder %s16, 2
      %p82 = por %p80, %p81
      %p83 = scmp.ne.s32.totalorder %s75, %s78
      %p84 = scmp.eq.s32.totalorder %s16, 0
      %p85 = por %p83, %p84
      %p86 = scmp.ne.s32.totalorder %s75, %s78
      %p87 = scmp.eq.s32.totalorder %s21, 2
      %p88 = por %p86, %p87
      %p89 = scmp.ne.s32.totalorder %s78, %s79
      %p90 = scmp.eq.s32.totalorder %s21, 0
      %p91 = por %p89, %p90
      %p92 = scmp.ne.s32.totalorder %s78, %s79
      %p93 = scmp.eq.s32.totalorder %s22, 2
      %p94 = por %p92, %p93
      %p96 = scmp.ne.s32.totalorder %s79, %s95
      %p97 = scmp.eq.s32.totalorder %s22, 0
      %p98 = por %p96, %p97
      %s99 = ssub.s32 %s24, %s38
      %p100 = scmp.eq.s32.totalorder %s99, 0
      %s102 = sadd.s32 %s101, 1
      %s103 = scalar_select %p100, %s101, %s102
      %p106 = pneg %p100
      %p107 = scmp.eq.s32.totalorder %s16, 2
      %p108 = por %p106, %p107
      %p109 = scmp.ne.s32.totalorder %s101, %s104
      %p110 = scmp.eq.s32.totalorder %s16, 0
      %p111 = por %p109, %p110
      %p112 = scmp.ne.s32.totalorder %s101, %s104
      %p113 = scmp.eq.s32.totalorder %s21, 2
      %p114 = por %p112, %p113
      %p115 = scmp.ne.s32.totalorder %s104, %s105
      %p116 = scmp.eq.s32.totalorder %s21, 0
      %p117 = por %p115, %p116
      %p118 = scmp.ne.s32.totalorder %s104, %s105
      %p119 = scmp.eq.s32.totalorder %s22, 2
      %p120 = por %p118, %p119
      %p122 = scmp.ne.s32.totalorder %s105, %s121
      %p123 = scmp.eq.s32.totalorder %s22, 0
      %p124 = por %p122, %p123
      %s125 = ssub.s32 %s23, %s42
      %s126 = ssub.s32 %s24, %s38
      %s127 = sor.u32 %s125, %s126
      %p128 = scmp.eq.s32.totalorder %s127, 0
      %s130 = sadd.s32 %s129, 1
      %s131 = scalar_select %p128, %s129, %s130
      %p134 = pneg %p128
      %p135 = scmp.eq.s32.totalorder %s16, 2
      %p136 = por %p134, %p135
      %p137 = scmp.ne.s32.totalorder %s129, %s132
      %p138 = scmp.eq.s32.totalorder %s16, 0
      %p139 = por %p137, %p138
      %p140 = scmp.ne.s32.totalorder %s129, %s132
      %p141 = scmp.eq.s32.totalorder %s21, 2
      %p142 = por %p140, %p141
      %p143 = scmp.ne.s32.totalorder %s132, %s133
      %p144 = scmp.eq.s32.totalorder %s21, 0
      %p145 = por %p143, %p144
      %p146 = scmp.ne.s32.totalorder %s132, %s133
      %p147 = scmp.eq.s32.totalorder %s22, 2
      %p148 = por %p146, %p147
      %p150 = scmp.ne.s32.totalorder %s133, %s149
      %p151 = scmp.eq.s32.totalorder %s22, 0
      %p152 = por %p150, %p151
      %p153 = scmp.le.s32.totalorder 1, %s16
      %p154 = scmp.lt.s32.totalorder %s16, 4
      %p155 = pnand %p153, %p154
      %p156 = pneg %p155
      // Predicated region
      $region9: #{tpu_custom_call.1} parent=5 // pred_check
        _
      $region10: #{tpu_custom_call.1} parent=5 // pred_check_branch
        %158 = sbr.rel (%p155) target = $region12
      $region11: #{tpu_custom_call.1} parent=5 // pred_region
        %s159 = ssub.s32 %s16, 1
        // Predicated region
        $region13: #{tpu_custom_call.1} parent=11 // pred_check
          %p160 = pneg %p91
        $region14: #{tpu_custom_call.1} parent=11 // pred_check_branch
          %162 = sbr.rel (%p160) target = $region16
        $region15: #{tpu_custom_call.1} parent=11 // pred_region
          %s163 = smul.u32 16, %s28
          %165 = vsyncadd [#allocation7], 0
          %s166 = sadd.s32 %s27, %s163
          %s167 = smul.addr %s166, 4
          %s168 = scalar_lea.hbm %s1, %s167
          %s169 = sshll.u32 %s168, 4
          %s170 = int_to_ptr.hbm [resolvable:$true] %s169
          %s171 = sshll.u32 [#allocation6], 4
          %s172 = int_to_ptr.vmem [resolvable:$true] %s171
          %177 = dma.hbm_to_vmem [thread:$0]  %s170, 1024, %s172, [#allocation7], 64, 64, 4
        $region16: #{tpu_custom_call.1} parent=11 // pred_fallthru
          _
        // Predicated region
        $region17: #{tpu_custom_call.1} parent=11 // pred_check
          %p178 = pneg %p117
        $region18: #{tpu_custom_call.1} parent=11 // pred_check_branch
          %180 = sbr.rel (%p178) target = $region20
        $region19: #{tpu_custom_call.1} parent=11 // pred_region
          %182 = vsyncadd [#allocation7], 0
          %s183 = smul.addr %s27, 8
          %s184 = scalar_lea.hbm %s2, %s183
          %s186 = sshll.u32 %s184, 4
          %s187 = int_to_ptr.hbm [resolvable:$true] %s186
          %s188 = sshll.u32 [#allocation8], 4
          %s189 = int_to_ptr.vmem [resolvable:$true] %s188
          %191 = dma.hbm_to_vmem [thread:$0]  %s187, 128, %s189, [#allocation7]
        $region20: #{tpu_custom_call.1} parent=11 // pred_fallthru
          _
      $region12: #{tpu_custom_call.1} parent=5 // pred_fallthru
        _
      %p192 = scmp.lt.s32.totalorder %s16, 3
      // Predicated region
      $region21: #{tpu_custom_call.1} parent=5 // pred_check
        %p193 = pneg %p192
      $region22: #{tpu_custom_call.1} parent=5 // pred_check_branch
        %195 = sbr.rel (%p193) target = $region24
      $region23: #{tpu_custom_call.1} parent=5 // pred_region
        // Predicated region
        $region25: #{tpu_custom_call.1} parent=23 // pred_check
          %p196 = pneg %p57
        $region26: #{tpu_custom_call.1} parent=23 // pred_check_branch
          %198 = sbr.rel (%p196) target = $region28
        $region27: #{tpu_custom_call.1} parent=23 // pred_region
          %s199 = sand.u32 %s47, 1
          %s200 = scalar_lea.sflag [#allocation4], %s199
          %s201 = sand.u32 %s47, 1
          %s202 = smul.addr %s201, 128
          %s203 = scalar_lea.vmem [#allocation3], %s202
          %s204 = smul.u32 32, %s23
          %206 = vsyncadd %s200, 0
          %s207 = sadd.s32 %s25, %s204
          %s208 = smul.addr %s207, 4
          %s209 = scalar_lea.hbm %s0, %s208
          %s210 = sshll.u32 %s209, 4
          %s211 = int_to_ptr.hbm [resolvable:$true] %s210
          %s212 = sshll.u32 %s203, 4
          %s213 = int_to_ptr.vmem [resolvable:$true] %s212
          %218 = dma.hbm_to_vmem [thread:$0]  %s211, 2048, %s213, %s200, 64, 64, 4
        $region28: #{tpu_custom_call.1} parent=23 // pred_fallthru
          _
      $region24: #{tpu_custom_call.1} parent=5 // pred_fallthru
        _
      %p219 = scmp.le.s32.totalorder 1, %s16
      %p220 = scmp.lt.s32.totalorder %s16, 4
      %p221 = pnand %p219, %p220
      %p222 = pneg %p221
      // Predicated region
      $region29: #{tpu_custom_call.1} parent=5 // pred_check
        _
      $region30: #{tpu_custom_call.1} parent=5 // pred_check_branch
        %224 = sbr.rel (%p221) target = $region32
      $region31: #{tpu_custom_call.1} parent=5 // pred_region
        %s225 = ssub.s32 %s16, 1
        %s226 = sand.u32 %s50, 1
        %s227 = scalar_lea.sflag [#allocation4], %s226
        %s228 = sand.u32 %s50, 1
        %s229 = smul.addr %s228, 128
        %s230 = scalar_lea.vmem [#allocation3], %s229
        // Predicated region
        $region33: #{tpu_custom_call.1} parent=31 // pred_check
          %p231 = pneg %p63
        $region34: #{tpu_custom_call.1} parent=31 // pred_check_branch
          %233 = sbr.rel (%p231) target = $region36
        $region35: #{tpu_custom_call.1} parent=31 // pred_region
          %235 = dma.done %s227, 2048
        $region36: #{tpu_custom_call.1} parent=31 // pred_fallthru
          _
        // Predicated region
        $region37: #{tpu_custom_call.1} parent=31 // pred_check
          %p236 = pneg %p91
        $region38: #{tpu_custom_call.1} parent=31 // pred_check_branch
          %238 = sbr.rel (%p236) target = $region40
        $region39: #{tpu_custom_call.1} parent=31 // pred_region
          %240 = dma.done [#allocation7], 1024
        $region40: #{tpu_custom_call.1} parent=31 // pred_fallthru
          _
        // Predicated region
        $region41: #{tpu_custom_call.1} parent=31 // pred_check
          %p241 = pneg %p117
        $region42: #{tpu_custom_call.1} parent=31 // pred_check_branch
          %243 = sbr.rel (%p241) target = $region44
        $region43: #{tpu_custom_call.1} parent=31 // pred_region
          %245 = dma.done [#allocation7], 128
        $region44: #{tpu_custom_call.1} parent=31 // pred_fallthru
          _
        %s246 = sand.u32 %s50, 1
        %s247 = scalar_lea.sflag [#allocation4], %s246
        %s248 = sand.u32 %s50, 1
        %s249 = smul.addr %s248, 128
        %s250 = scalar_lea.vmem [#allocation3], %s249
        %p251 = pneg %p63
        %p252 = pneg %p60
        %p253 = pneg %p91
        %p254 = pneg %p88
        %p255 = pneg %p117
        %p256 = pneg %p114
        %p257 = pneg %p145
        %p258 = pneg %p142
        %s259 = sand.u32 %s132, 1
        %s260 = scalar_lea.sflag [#allocation5], %s259
        %s261 = sand.u32 %s132, 1
        %s262 = smul.addr %s261, 256
        %s263 = scalar_lea.vmem [#allocation9], %s262
        %s264 = smul.u32 32, %s26
        %s265 = smul.u32 16, %s28
        %s266 = smul.u32 32, %s26
        %p267 = scmp.eq.s32.totalorder %s28, 0
        // Predicated region
        $region45: #{tpu_custom_call.1} parent=31 // pred_check
          %p268 = pneg %p267
        $region46: #{tpu_custom_call.1} parent=31 // pred_check_branch
          %270 = sbr.rel (%p268) target = $region48
        $region47: #{tpu_custom_call.1} parent=31 // pred_region
          %271 = vst [vmem:[#allocation2] sm:$0xff] 0.0
          %272 = vst [vmem:[#allocation2 + $0x8] sm:$0xff] 0.0
          %273 = vst [vmem:[#allocation2 + $0x10] sm:$0xff] 0.0
          %274 = vst [vmem:[#allocation2 + $0x18] sm:$0xff] 0.0
          %275 = vst [vmem:[#allocation2 + $0x20] sm:$0xff] 0.0
          %276 = vst [vmem:[#allocation2 + $0x28] sm:$0xff] 0.0
          %277 = vst [vmem:[#allocation2 + $0x30] sm:$0xff] 0.0
          %278 = vst [vmem:[#allocation2 + $0x38] sm:$0xff] 0.0
          %279 = vst [vmem:[#allocation2 + $0x40] sm:$0xff] 0.0
          %280 = vst [vmem:[#allocation2 + $0x48] sm:$0xff] 0.0
          %281 = vst [vmem:[#allocation2 + $0x50] sm:$0xff] 0.0
          %282 = vst [vmem:[#allocation2 + $0x58] sm:$0xff] 0.0
          %283 = vst [vmem:[#allocation2 + $0x60] sm:$0xff] 0.0
          %284 = vst [vmem:[#allocation2 + $0x68] sm:$0xff] 0.0
          %285 = vst [vmem:[#allocation2 + $0x70] sm:$0xff] 0.0
          %286 = vst [vmem:[#allocation2 + $0x78] sm:$0xff] 0.0
          %287 = vst [vmem:[#allocation2 + $0x80] sm:$0xff] 0.0
          %288 = vst [vmem:[#allocation2 + $0x88] sm:$0xff] 0.0
          %289 = vst [vmem:[#allocation2 + $0x90] sm:$0xff] 0.0
          %290 = vst [vmem:[#allocation2 + $0x98] sm:$0xff] 0.0
          %291 = vst [vmem:[#allocation2 + $0xa0] sm:$0xff] 0.0
          %292 = vst [vmem:[#allocation2 + $0xa8] sm:$0xff] 0.0
          %293 = vst [vmem:[#allocation2 + $0xb0] sm:$0xff] 0.0
          %294 = vst [vmem:[#allocation2 + $0xb8] sm:$0xff] 0.0
          %295 = vst [vmem:[#allocation2 + $0xc0] sm:$0xff] 0.0
          %296 = vst [vmem:[#allocation2 + $0xc8] sm:$0xff] 0.0
          %297 = vst [vmem:[#allocation2 + $0xd0] sm:$0xff] 0.0
          %298 = vst [vmem:[#allocation2 + $0xd8] sm:$0xff] 0.0
          %299 = vst [vmem:[#allocation2 + $0xe0] sm:$0xff] 0.0
          %300 = vst [vmem:[#allocation2 + $0xe8] sm:$0xff] 0.0
          %301 = vst [vmem:[#allocation2 + $0xf0] sm:$0xff] 0.0
          %302 = vst [vmem:[#allocation2 + $0xf8] sm:$0xff] 0.0
        $region48: #{tpu_custom_call.1} parent=31 // pred_fallthru
          _
        %v303 = vld [vmem:[#allocation6] sm:$0xf]
        %v304 = vld [vmem:[#allocation6 + $0x4] sm:$0xf]
        %v305 = vld [vmem:[#allocation6 + $0x8] sm:$0xf]
        %v306 = vld [vmem:[#allocation6 + $0xc] sm:$0xf]
        %v307 = vld [vmem:[#allocation6 + $0x10] sm:$0xf]
        %v308 = vld [vmem:[#allocation6 + $0x14] sm:$0xf]
        %v309 = vld [vmem:[#allocation6 + $0x18] sm:$0xf]
        %v310 = vld [vmem:[#allocation6 + $0x1c] sm:$0xf]
        %v311 = vld [vmem:[#allocation6 + $0x20] sm:$0xf]
        %v312 = vld [vmem:[#allocation6 + $0x24] sm:$0xf]
        %v313 = vld [vmem:[#allocation6 + $0x28] sm:$0xf]
        %v314 = vld [vmem:[#allocation6 + $0x2c] sm:$0xf]
        %v315 = vld [vmem:[#allocation6 + $0x30] sm:$0xf]
        %v316 = vld [vmem:[#allocation6 + $0x34] sm:$0xf]
        %v317 = vld [vmem:[#allocation6 + $0x38] sm:$0xf]
        %v318 = vld [vmem:[#allocation6 + $0x3c] sm:$0xf]
        %v319 = vld [vmem:[#allocation2] sm:$0xff]
        %v320 = vld [vmem:[#allocation2 + $0x8] sm:$0xff]
        %v321 = vld [vmem:[#allocation2 + $0x10] sm:$0xff]
        %v322 = vld [vmem:[#allocation2 + $0x18] sm:$0xff]
        %v323 = vld [vmem:[#allocation2 + $0x20] sm:$0xff]
        %v324 = vld [vmem:[#allocation2 + $0x28] sm:$0xff]
        %v325 = vld [vmem:[#allocation2 + $0x30] sm:$0xff]
        %v326 = vld [vmem:[#allocation2 + $0x38] sm:$0xff]
        %v327 = vld [vmem:[#allocation2 + $0x40] sm:$0xff]
        %v328 = vld [vmem:[#allocation2 + $0x48] sm:$0xff]
        %v329 = vld [vmem:[#allocation2 + $0x50] sm:$0xff]
        %v330 = vld [vmem:[#allocation2 + $0x58] sm:$0xff]
        %v331 = vld [vmem:[#allocation2 + $0x60] sm:$0xff]
        %v332 = vld [vmem:[#allocation2 + $0x68] sm:$0xff]
        %v333 = vld [vmem:[#allocation2 + $0x70] sm:$0xff]
        %v334 = vld [vmem:[#allocation2 + $0x78] sm:$0xff]
        %v335 = vld [vmem:[#allocation2 + $0x80] sm:$0xff]
        %v336 = vld [vmem:[#allocation2 + $0x88] sm:$0xff]
        %v337 = vld [vmem:[#allocation2 + $0x90] sm:$0xff]
        %v338 = vld [vmem:[#allocation2 + $0x98] sm:$0xff]
        %v339 = vld [vmem:[#allocation2 + $0xa0] sm:$0xff]
        %v340 = vld [vmem:[#allocation2 + $0xa8] sm:$0xff]
        %v341 = vld [vmem:[#allocation2 + $0xb0] sm:$0xff]
        %v342 = vld [vmem:[#allocation2 + $0xb8] sm:$0xff]
        %v343 = vld [vmem:[#allocation2 + $0xc0] sm:$0xff]
        %v344 = vld [vmem:[#allocation2 + $0xc8] sm:$0xff]
        %v345 = vld [vmem:[#allocation2 + $0xd0] sm:$0xff]
        %v346 = vld [vmem:[#allocation2 + $0xd8] sm:$0xff]
        %v347 = vld [vmem:[#allocation2 + $0xe0] sm:$0xff]
        %v348 = vld [vmem:[#allocation2 + $0xe8] sm:$0xff]
        %v349 = vld [vmem:[#allocation2 + $0xf0] sm:$0xff]
        %v350 = vld [vmem:[#allocation2 + $0xf8] sm:$0xff]
        %v351 = vld [vmem:[%s230] sm:$0xf]
        %v352 = vld [vmem:[%s230 + $0x4] sm:$0xf]
        %v353 = vld [vmem:[%s230 + $0x8] sm:$0xf]
        %v354 = vld [vmem:[%s230 + $0xc] sm:$0xf]
        %v355 = vld [vmem:[%s230 + $0x10] sm:$0xf]
        %v356 = vld [vmem:[%s230 + $0x14] sm:$0xf]
        %v357 = vld [vmem:[%s230 + $0x18] sm:$0xf]
        %v358 = vld [vmem:[%s230 + $0x1c] sm:$0xf]
        %v359 = vld [vmem:[%s230 + $0x20] sm:$0xf]
        %v360 = vld [vmem:[%s230 + $0x24] sm:$0xf]
        %v361 = vld [vmem:[%s230 + $0x28] sm:$0xf]
        %v362 = vld [vmem:[%s230 + $0x2c] sm:$0xf]
        %v363 = vld [vmem:[%s230 + $0x30] sm:$0xf]
        %v364 = vld [vmem:[%s230 + $0x34] sm:$0xf]
        %v365 = vld [vmem:[%s230 + $0x38] sm:$0xf]
        %v366 = vld [vmem:[%s230 + $0x3c] sm:$0xf]
        %v367 = vld [vmem:[%s230 + $0x40] sm:$0xf]
        %v368 = vld [vmem:[%s230 + $0x44] sm:$0xf]
        %v369 = vld [vmem:[%s230 + $0x48] sm:$0xf]
        %v370 = vld [vmem:[%s230 + $0x4c] sm:$0xf]
        %v371 = vld [vmem:[%s230 + $0x50] sm:$0xf]
        %v372 = vld [vmem:[%s230 + $0x54] sm:$0xf]
        %v373 = vld [vmem:[%s230 + $0x58] sm:$0xf]
        %v374 = vld [vmem:[%s230 + $0x5c] sm:$0xf]
        %v375 = vld [vmem:[%s230 + $0x60] sm:$0xf]
        %v376 = vld [vmem:[%s230 + $0x64] sm:$0xf]
        %v377 = vld [vmem:[%s230 + $0x68] sm:$0xf]
        %v378 = vld [vmem:[%s230 + $0x6c] sm:$0xf]
        %v379 = vld [vmem:[%s230 + $0x70] sm:$0xf]
        %v380 = vld [vmem:[%s230 + $0x74] sm:$0xf]
        %v381 = vld [vmem:[%s230 + $0x78] sm:$0xf]
        %v382 = vld [vmem:[%s230 + $0x7c] sm:$0xf]
        %v415 = vunpack.c.l.b16 %v351
        %v416 = vunpack.c.l.b16 %v352
        %v417 = vunpack.c.l.b16 %v353
        %v418 = vunpack.c.l.b16 %v354
        %v419 = vunpack.c.l.b16 %v355
        %v420 = vunpack.c.l.b16 %v356
        %v421 = vunpack.c.l.b16 %v357
        %v422 = vunpack.c.l.b16 %v358
        %v423 = vunpack.c.l.b16 %v359
        %v424 = vunpack.c.l.b16 %v360
        %v425 = vunpack.c.l.b16 %v361
        %v426 = vunpack.c.l.b16 %v362
        %v427 = vunpack.c.l.b16 %v363
        %v428 = vunpack.c.l.b16 %v364
        %v429 = vunpack.c.l.b16 %v365
        %v430 = vunpack.c.l.b16 %v366
        %v431 = vunpack.c.l.b16 %v367
        %v432 = vunpack.c.l.b16 %v368
        %v433 = vunpack.c.l.b16 %v369
        %v434 = vunpack.c.l.b16 %v370
        %v435 = vunpack.c.l.b16 %v371
        %v436 = vunpack.c.l.b16 %v372
        %v437 = vunpack.c.l.b16 %v373
        %v438 = vunpack.c.l.b16 %v374
        %v439 = vunpack.c.l.b16 %v375
        %v440 = vunpack.c.l.b16 %v376
        %v441 = vunpack.c.l.b16 %v377
        %v442 = vunpack.c.l.b16 %v378
        %v443 = vunpack.c.l.b16 %v379
        %v444 = vunpack.c.l.b16 %v380
        %v445 = vunpack.c.l.b16 %v381
        %v446 = vunpack.c.l.b16 %v382
        %v447 = vpack.c.b16 %v416, %v415
        %v448 = vpack.c.b16 %v418, %v417
        %v449 = vpack.c.b16 %v420, %v419
        %v450 = vpack.c.b16 %v422, %v421
        %v451 = vpack.c.b16 %v424, %v423
        %v452 = vpack.c.b16 %v426, %v425
        %v453 = vpack.c.b16 %v428, %v427
        %v454 = vpack.c.b16 %v430, %v429
        %v455 = vpack.c.b16 %v432, %v431
        %v456 = vpack.c.b16 %v434, %v433
        %v457 = vpack.c.b16 %v436, %v435
        %v458 = vpack.c.b16 %v438, %v437
        %v459 = vpack.c.b16 %v440, %v439
        %v460 = vpack.c.b16 %v442, %v441
        %v461 = vpack.c.b16 %v444, %v443
        %v462 = vpack.c.b16 %v446, %v445
        %v495 = vunpack.c.l.b16 %v303
        %v496 = vunpack.c.l.b16 %v304
        %v497 = vunpack.c.l.b16 %v305
        %v498 = vunpack.c.l.b16 %v306
        %v499 = vunpack.c.l.b16 %v307
        %v500 = vunpack.c.l.b16 %v308
        %v501 = vunpack.c.l.b16 %v309
        %v502 = vunpack.c.l.b16 %v310
        %v503 = vunpack.c.l.b16 %v311
        %v504 = vunpack.c.l.b16 %v312
        %v505 = vunpack.c.l.b16 %v313
        %v506 = vunpack.c.l.b16 %v314
        %v507 = vunpack.c.l.b16 %v315
        %v508 = vunpack.c.l.b16 %v316
        %v509 = vunpack.c.l.b16 %v317
        %v510 = vunpack.c.l.b16 %v318
        %v511 = vpack.c.b16 %v496, %v495
        %v512 = vpack.c.b16 %v498, %v497
        %v513 = vpack.c.b16 %v500, %v499
        %v514 = vpack.c.b16 %v502, %v501
        %v515 = vpack.c.b16 %v504, %v503
        %v516 = vpack.c.b16 %v506, %v505
        %v517 = vpack.c.b16 %v508, %v507
        %v518 = vpack.c.b16 %v510, %v509
        %527 = vmatpush.bf16.msra.mxu0 %v518
        %528 = vmatpush.bf16.msra.mxu0 %v517
        %529 = vmatpush.bf16.msra.mxu0 %v516
        %530 = vmatpush.bf16.msra.mxu0 %v515
        %531 = vmatpush.bf16.msra.mxu0 %v514
        %532 = vmatpush.bf16.msra.mxu0 %v513
        %533 = vmatpush.bf16.msra.mxu0 %v512
        %534 = vmatpush.bf16.msra.mxu0 %v511
        %535 = vmatmul.bf16.gmra.mxu0 %v447
        %v536 = vpop.f32.mrf.mxu0
        %v537 = vadd.f32 0.0, %v536
        %v538 = vpop.f32.mrf.mxu0
        %v539 = vadd.f32 0.0, %v538
        %540 = vmatmul.bf16.gmra.mxu0 %v448
        %v541 = vpop.f32.mrf.mxu0
        %v542 = vadd.f32 0.0, %v541
        %v543 = vpop.f32.mrf.mxu0
        %v544 = vadd.f32 0.0, %v543
        %545 = vmatmul.bf16.gmra.mxu0 %v449
        %v546 = vpop.f32.mrf.mxu0
        %v547 = vadd.f32 0.0, %v546
        %v548 = vpop.f32.mrf.mxu0
        %v549 = vadd.f32 0.0, %v548
        %550 = vmatmul.bf16.gmra.mxu0 %v450
        %v551 = vpop.f32.mrf.mxu0
        %v552 = vadd.f32 0.0, %v551
        %v553 = vpop.f32.mrf.mxu0
        %v554 = vadd.f32 0.0, %v553
        %555 = vmatmul.bf16.gmra.mxu0 %v451
        %v556 = vpop.f32.mrf.mxu0
        %v557 = vadd.f32 0.0, %v556
        %v558 = vpop.f32.mrf.mxu0
        %v559 = vadd.f32 0.0, %v558
        %560 = vmatmul.bf16.gmra.mxu0 %v452
        %v561 = vpop.f32.mrf.mxu0
        %v562 = vadd.f32 0.0, %v561
        %v563 = vpop.f32.mrf.mxu0
        %v564 = vadd.f32 0.0, %v563
        %565 = vmatmul.bf16.gmra.mxu0 %v453
        %v566 = vpop.f32.mrf.mxu0
        %v567 = vadd.f32 0.0, %v566
        %v568 = vpop.f32.mrf.mxu0
        %v569 = vadd.f32 0.0, %v568
        %570 = vmatmul.bf16.gmra.mxu0 %v454
        %v571 = vpop.f32.mrf.mxu0
        %v572 = vadd.f32 0.0, %v571
        %v573 = vpop.f32.mrf.mxu0
        %v574 = vadd.f32 0.0, %v573
        %575 = vmatmul.bf16.gmra.mxu0 %v455
        %v576 = vpop.f32.mrf.mxu0
        %v577 = vadd.f32 0.0, %v576
        %v578 = vpop.f32.mrf.mxu0
        %v579 = vadd.f32 0.0, %v578
        %580 = vmatmul.bf16.gmra.mxu0 %v456
        %v581 = vpop.f32.mrf.mxu0
        %v582 = vadd.f32 0.0, %v581
        %v583 = vpop.f32.mrf.mxu0
        %v584 = vadd.f32 0.0, %v583
        %585 = vmatmul.bf16.gmra.mxu0 %v457
        %v586 = vpop.f32.mrf.mxu0
        %v587 = vadd.f32 0.0, %v586
        %v588 = vpop.f32.mrf.mxu0
        %v589 = vadd.f32 0.0, %v588
        %590 = vmatmul.bf16.gmra.mxu0 %v458
        %v591 = vpop.f32.mrf.mxu0
        %v592 = vadd.f32 0.0, %v591
        %v593 = vpop.f32.mrf.mxu0
        %v594 = vadd.f32 0.0, %v593
        %595 = vmatmul.bf16.gmra.mxu0 %v459
        %v596 = vpop.f32.mrf.mxu0
        %v597 = vadd.f32 0.0, %v596
        %v598 = vpop.f32.mrf.mxu0
        %v599 = vadd.f32 0.0, %v598
        %600 = vmatmul.bf16.gmra.mxu0 %v460
        %v601 = vpop.f32.mrf.mxu0
        %v602 = vadd.f32 0.0, %v601
        %v603 = vpop.f32.mrf.mxu0
        %v604 = vadd.f32 0.0, %v603
        %605 = vmatmul.bf16.gmra.mxu0 %v461
        %v606 = vpop.f32.mrf.mxu0
        %v607 = vadd.f32 0.0, %v606
        %v608 = vpop.f32.mrf.mxu0
        %v609 = vadd.f32 0.0, %v608
        %610 = vmatmul.bf16.gmra.mxu0 %v462
        %v611 = vpop.f32.mrf.mxu0
        %v612 = vadd.f32 0.0, %v611
        %v613 = vpop.f32.mrf.mxu0
        %v614 = vadd.f32 0.0, %v613
        %615 = vdwg.mxu0
        %v616 = vadd.f32 %v319, %v537
        %v617 = vadd.f32 %v320, %v539
        %v618 = vadd.f32 %v321, %v542
        %v619 = vadd.f32 %v322, %v544
        %v620 = vadd.f32 %v323, %v547
        %v621 = vadd.f32 %v324, %v549
        %v622 = vadd.f32 %v325, %v552
        %v623 = vadd.f32 %v326, %v554
        %v624 = vadd.f32 %v327, %v557
        %v625 = vadd.f32 %v328, %v559
        %v626 = vadd.f32 %v329, %v562
        %v627 = vadd.f32 %v330, %v564
        %v628 = vadd.f32 %v331, %v567
        %v629 = vadd.f32 %v332, %v569
        %v630 = vadd.f32 %v333, %v572
        %v631 = vadd.f32 %v334, %v574
        %v632 = vadd.f32 %v335, %v577
        %v633 = vadd.f32 %v336, %v579
        %v634 = vadd.f32 %v337, %v582
        %v635 = vadd.f32 %v338, %v584
        %v636 = vadd.f32 %v339, %v587
        %v637 = vadd.f32 %v340, %v589
        %v638 = vadd.f32 %v341, %v592
        %v639 = vadd.f32 %v342, %v594
        %v640 = vadd.f32 %v343, %v597
        %v641 = vadd.f32 %v344, %v599
        %v642 = vadd.f32 %v345, %v602
        %v643 = vadd.f32 %v346, %v604
        %v644 = vadd.f32 %v347, %v607
        %v645 = vadd.f32 %v348, %v609
        %v646 = vadd.f32 %v349, %v612
        %v647 = vadd.f32 %v350, %v614
        %648 = vst [vmem:[#allocation2] sm:$0xff] %v616
        %649 = vst [vmem:[#allocation2 + $0x8] sm:$0xff] %v617
        %650 = vst [vmem:[#allocation2 + $0x10] sm:$0xff] %v618
        %651 = vst [vmem:[#allocation2 + $0x18] sm:$0xff] %v619
        %652 = vst [vmem:[#allocation2 + $0x20] sm:$0xff] %v620
        %653 = vst [vmem:[#allocation2 + $0x28] sm:$0xff] %v621
        %654 = vst [vmem:[#allocation2 + $0x30] sm:$0xff] %v622
        %655 = vst [vmem:[#allocation2 + $0x38] sm:$0xff] %v623
        %656 = vst [vmem:[#allocation2 + $0x40] sm:$0xff] %v624
        %657 = vst [vmem:[#allocation2 + $0x48] sm:$0xff] %v625
        %658 = vst [vmem:[#allocation2 + $0x50] sm:$0xff] %v626
        %659 = vst [vmem:[#allocation2 + $0x58] sm:$0xff] %v627
        %660 = vst [vmem:[#allocation2 + $0x60] sm:$0xff] %v628
        %661 = vst [vmem:[#allocation2 + $0x68] sm:$0xff] %v629
        %662 = vst [vmem:[#allocation2 + $0x70] sm:$0xff] %v630
        %663 = vst [vmem:[#allocation2 + $0x78] sm:$0xff] %v631
        %664 = vst [vmem:[#allocation2 + $0x80] sm:$0xff] %v632
        %665 = vst [vmem:[#allocation2 + $0x88] sm:$0xff] %v633
        %666 = vst [vmem:[#allocation2 + $0x90] sm:$0xff] %v634
        %667 = vst [vmem:[#allocation2 + $0x98] sm:$0xff] %v635
        %668 = vst [vmem:[#allocation2 + $0xa0] sm:$0xff] %v636
        %669 = vst [vmem:[#allocation2 + $0xa8] sm:$0xff] %v637
        %670 = vst [vmem:[#allocation2 + $0xb0] sm:$0xff] %v638
        %671 = vst [vmem:[#allocation2 + $0xb8] sm:$0xff] %v639
        %672 = vst [vmem:[#allocation2 + $0xc0] sm:$0xff] %v640
        %673 = vst [vmem:[#allocation2 + $0xc8] sm:$0xff] %v641
        %674 = vst [vmem:[#allocation2 + $0xd0] sm:$0xff] %v642
        %675 = vst [vmem:[#allocation2 + $0xd8] sm:$0xff] %v643
        %676 = vst [vmem:[#allocation2 + $0xe0] sm:$0xff] %v644
        %677 = vst [vmem:[#allocation2 + $0xe8] sm:$0xff] %v645
        %678 = vst [vmem:[#allocation2 + $0xf0] sm:$0xff] %v646
        %679 = vst [vmem:[#allocation2 + $0xf8] sm:$0xff] %v647
        // Predicated region
        $region49: #{tpu_custom_call.1} parent=31 // pred_check
          %p680 = pneg %p267
        $region50: #{tpu_custom_call.1} parent=31 // pred_check_branch
          %682 = sbr.rel (%p680) target = $region52
        $region51: #{tpu_custom_call.1} parent=31 // pred_region
          %v683 = vld [vmem:[#allocation2] sm:$0xff]
          %v684 = vld [vmem:[#allocation2 + $0x8] sm:$0xff]
          %v685 = vld [vmem:[#allocation2 + $0x10] sm:$0xff]
          %v686 = vld [vmem:[#allocation2 + $0x18] sm:$0xff]
          %v687 = vld [vmem:[#allocation2 + $0x20] sm:$0xff]
          %v688 = vld [vmem:[#allocation2 + $0x28] sm:$0xff]
          %v689 = vld [vmem:[#allocation2 + $0x30] sm:$0xff]
          %v690 = vld [vmem:[#allocation2 + $0x38] sm:$0xff]
          %v691 = vld [vmem:[#allocation2 + $0x40] sm:$0xff]
          %v692 = vld [vmem:[#allocation2 + $0x48] sm:$0xff]
          %v693 = vld [vmem:[#allocation2 + $0x50] sm:$0xff]
          %v694 = vld [vmem:[#allocation2 + $0x58] sm:$0xff]
          %v695 = vld [vmem:[#allocation2 + $0x60] sm:$0xff]
          %v696 = vld [vmem:[#allocation2 + $0x68] sm:$0xff]
          %v697 = vld [vmem:[#allocation2 + $0x70] sm:$0xff]
          %v698 = vld [vmem:[#allocation2 + $0x78] sm:$0xff]
          %v699 = vld [vmem:[#allocation2 + $0x80] sm:$0xff]
          %v700 = vld [vmem:[#allocation2 + $0x88] sm:$0xff]
          %v701 = vld [vmem:[#allocation2 + $0x90] sm:$0xff]
          %v702 = vld [vmem:[#allocation2 + $0x98] sm:$0xff]
          %v703 = vld [vmem:[#allocation2 + $0xa0] sm:$0xff]
          %v704 = vld [vmem:[#allocation2 + $0xa8] sm:$0xff]
          %v705 = vld [vmem:[#allocation2 + $0xb0] sm:$0xff]
          %v706 = vld [vmem:[#allocation2 + $0xb8] sm:$0xff]
          %v707 = vld [vmem:[#allocation2 + $0xc0] sm:$0xff]
          %v708 = vld [vmem:[#allocation2 + $0xc8] sm:$0xff]
          %v709 = vld [vmem:[#allocation2 + $0xd0] sm:$0xff]
          %v710 = vld [vmem:[#allocation2 + $0xd8] sm:$0xff]
          %v711 = vld [vmem:[#allocation2 + $0xe0] sm:$0xff]
          %v712 = vld [vmem:[#allocation2 + $0xe8] sm:$0xff]
          %v713 = vld [vmem:[#allocation2 + $0xf0] sm:$0xff]
          %v714 = vld [vmem:[#allocation2 + $0xf8] sm:$0xff]
          %v715 = vld [vmem:[#allocation8] sm:$0xff]
          %v716 = vperm.slane %v715, 0
          %v717 = vadd.f32 %v683, %v716
          %v718 = vadd.f32 %v684, %v716
          %v719 = vadd.f32 %v685, %v716
          %v720 = vadd.f32 %v686, %v716
          %v721 = vadd.f32 %v687, %v716
          %v722 = vadd.f32 %v688, %v716
          %v723 = vadd.f32 %v689, %v716
          %v724 = vadd.f32 %v690, %v716
          %v725 = vadd.f32 %v691, %v716
          %v726 = vadd.f32 %v692, %v716
          %v727 = vadd.f32 %v693, %v716
          %v728 = vadd.f32 %v694, %v716
          %v729 = vadd.f32 %v695, %v716
          %v730 = vadd.f32 %v696, %v716
          %v731 = vadd.f32 %v697, %v716
          %v732 = vadd.f32 %v698, %v716
          %v733 = vadd.f32 %v699, %v716
          %v734 = vadd.f32 %v700, %v716
          %v735 = vadd.f32 %v701, %v716
          %v736 = vadd.f32 %v702, %v716
          %v737 = vadd.f32 %v703, %v716
          %v738 = vadd.f32 %v704, %v716
          %v739 = vadd.f32 %v705, %v716
          %v740 = vadd.f32 %v706, %v716
          %v741 = vadd.f32 %v707, %v716
          %v742 = vadd.f32 %v708, %v716
          %v743 = vadd.f32 %v709, %v716
          %v744 = vadd.f32 %v710, %v716
          %v745 = vadd.f32 %v711, %v716
          %v746 = vadd.f32 %v712, %v716
          %v747 = vadd.f32 %v713, %v716
          %v748 = vadd.f32 %v714, %v716
          %v749 = vperm.slane %v715, 1
          %v750 = vmul.f32 %v717, %v749
          %v751 = vmul.f32 %v718, %v749
          %v752 = vmul.f32 %v719, %v749
          %v753 = vmul.f32 %v720, %v749
          %v754 = vmul.f32 %v721, %v749
          %v755 = vmul.f32 %v722, %v749
          %v756 = vmul.f32 %v723, %v749
          %v757 = vmul.f32 %v724, %v749
          %v758 = vmul.f32 %v725, %v749
          %v759 = vmul.f32 %v726, %v749
          %v760 = vmul.f32 %v727, %v749
          %v761 = vmul.f32 %v728, %v749
          %v762 = vmul.f32 %v729, %v749
          %v763 = vmul.f32 %v730, %v749
          %v764 = vmul.f32 %v731, %v749
          %v765 = vmul.f32 %v732, %v749
          %v766 = vmul.f32 %v733, %v749
          %v767 = vmul.f32 %v734, %v749
          %v768 = vmul.f32 %v735, %v749
          %v769 = vmul.f32 %v736, %v749
          %v770 = vmul.f32 %v737, %v749
          %v771 = vmul.f32 %v738, %v749
          %v772 = vmul.f32 %v739, %v749
          %v773 = vmul.f32 %v740, %v749
          %v774 = vmul.f32 %v741, %v749
          %v775 = vmul.f32 %v742, %v749
          %v776 = vmul.f32 %v743, %v749
          %v777 = vmul.f32 %v744, %v749
          %v778 = vmul.f32 %v745, %v749
          %v779 = vmul.f32 %v746, %v749
          %v780 = vmul.f32 %v747, %v749
          %v781 = vmul.f32 %v748, %v749
          %v782 = vperm.slane %v715, 2
          %v783 = vadd.f32 %v750, %v782
          %v784 = vadd.f32 %v751, %v782
          %v785 = vadd.f32 %v752, %v782
          %v786 = vadd.f32 %v753, %v782
          %v787 = vadd.f32 %v754, %v782
          %v788 = vadd.f32 %v755, %v782
          %v789 = vadd.f32 %v756, %v782
          %v790 = vadd.f32 %v757, %v782
          %v791 = vadd.f32 %v758, %v782
          %v792 = vadd.f32 %v759, %v782
          %v793 = vadd.f32 %v760, %v782
          %v794 = vadd.f32 %v761, %v782
          %v795 = vadd.f32 %v762, %v782
          %v796 = vadd.f32 %v763, %v782
          %v797 = vadd.f32 %v764, %v782
          %v798 = vadd.f32 %v765, %v782
          %v799 = vadd.f32 %v766, %v782
          %v800 = vadd.f32 %v767, %v782
          %v801 = vadd.f32 %v768, %v782
          %v802 = vadd.f32 %v769, %v782
          %v803 = vadd.f32 %v770, %v782
          %v804 = vadd.f32 %v771, %v782
          %v805 = vadd.f32 %v772, %v782
          %v806 = vadd.f32 %v773, %v782
          %v807 = vadd.f32 %v774, %v782
          %v808 = vadd.f32 %v775, %v782
          %v809 = vadd.f32 %v776, %v782
          %v810 = vadd.f32 %v777, %v782
          %v811 = vadd.f32 %v778, %v782
          %v812 = vadd.f32 %v779, %v782
          %v813 = vadd.f32 %v780, %v782
          %v814 = vadd.f32 %v781, %v782
          %815 = vst [vmem:[%s263] sm:$0xff] %v783
          %816 = vst [vmem:[%s263 + $0x8] sm:$0xff] %v784
          %817 = vst [vmem:[%s263 + $0x10] sm:$0xff] %v785
          %818 = vst [vmem:[%s263 + $0x18] sm:$0xff] %v786
          %819 = vst [vmem:[%s263 + $0x20] sm:$0xff] %v787
          %820 = vst [vmem:[%s263 + $0x28] sm:$0xff] %v788
          %821 = vst [vmem:[%s263 + $0x30] sm:$0xff] %v789
          %822 = vst [vmem:[%s263 + $0x38] sm:$0xff] %v790
          %823 = vst [vmem:[%s263 + $0x40] sm:$0xff] %v791
          %824 = vst [vmem:[%s263 + $0x48] sm:$0xff] %v792
          %825 = vst [vmem:[%s263 + $0x50] sm:$0xff] %v793
          %826 = vst [vmem:[%s263 + $0x58] sm:$0xff] %v794
          %827 = vst [vmem:[%s263 + $0x60] sm:$0xff] %v795
          %828 = vst [vmem:[%s263 + $0x68] sm:$0xff] %v796
          %829 = vst [vmem:[%s263 + $0x70] sm:$0xff] %v797
          %830 = vst [vmem:[%s263 + $0x78] sm:$0xff] %v798
          %831 = vst [vmem:[%s263 + $0x80] sm:$0xff] %v799
          %832 = vst [vmem:[%s263 + $0x88] sm:$0xff] %v800
          %833 = vst [vmem:[%s263 + $0x90] sm:$0xff] %v801
          %834 = vst [vmem:[%s263 + $0x98] sm:$0xff] %v802
          %835 = vst [vmem:[%s263 + $0xa0] sm:$0xff] %v803
          %836 = vst [vmem:[%s263 + $0xa8] sm:$0xff] %v804
          %837 = vst [vmem:[%s263 + $0xb0] sm:$0xff] %v805
          %838 = vst [vmem:[%s263 + $0xb8] sm:$0xff] %v806
          %839 = vst [vmem:[%s263 + $0xc0] sm:$0xff] %v807
          %840 = vst [vmem:[%s263 + $0xc8] sm:$0xff] %v808
          %841 = vst [vmem:[%s263 + $0xd0] sm:$0xff] %v809
          %842 = vst [vmem:[%s263 + $0xd8] sm:$0xff] %v810
          %843 = vst [vmem:[%s263 + $0xe0] sm:$0xff] %v811
          %844 = vst [vmem:[%s263 + $0xe8] sm:$0xff] %v812
          %845 = vst [vmem:[%s263 + $0xf0] sm:$0xff] %v813
          %846 = vst [vmem:[%s263 + $0xf8] sm:$0xff] %v814
        $region52: #{tpu_custom_call.1} parent=31 // pred_fallthru
          _
        %s847 = sand.u32 %s132, 1
        %s848 = scalar_lea.sflag [#allocation5], %s847
        %s849 = sand.u32 %s132, 1
        %s850 = smul.addr %s849, 256
        %s851 = scalar_lea.vmem [#allocation9], %s850
        // Predicated region
        $region53: #{tpu_custom_call.1} parent=31 // pred_check
          %p852 = pneg %p142
        $region54: #{tpu_custom_call.1} parent=31 // pred_check_branch
          %854 = sbr.rel (%p852) target = $region56
        $region55: #{tpu_custom_call.1} parent=31 // pred_region
          %s855 = smul.u32 32, %s26
          %857 = vsyncadd %s848, 0
          %s858 = sadd.s32 %s27, %s855
          %s859 = smul.addr %s858, 8
          %s860 = scalar_lea.hbm %s3, %s859
          %s861 = sshll.u32 %s851, 4
          %s862 = int_to_ptr.vmem [resolvable:$true] %s861
          %s863 = sshll.u32 %s860, 4
          %s864 = int_to_ptr.hbm [resolvable:$true] %s863
          %869 = dma.vmem_to_hbm [thread:$0]  %s862, 4096, %s864, %s848, 128, 128, 8
        $region56: #{tpu_custom_call.1} parent=31 // pred_fallthru
          _
      $region32: #{tpu_custom_call.1} parent=5 // pred_fallthru
        _
      %p870 = scmp.le.s32.totalorder 2, %s16
      // Predicated region
      $region57: #{tpu_custom_call.1} parent=5 // pred_check
        %p871 = pneg %p870
      $region58: #{tpu_custom_call.1} parent=5 // pred_check_branch
        %873 = sbr.rel (%p871) target = $region60
      $region59: #{tpu_custom_call.1} parent=5 // pred_region
        %s874 = ssub.s32 %s16, 2
        // Predicated region
        $region61: #{tpu_custom_call.1} parent=59 // pred_check
          %p875 = pneg %p148
        $region62: #{tpu_custom_call.1} parent=59 // pred_check_branch
          %877 = sbr.rel (%p875) target = $region64
        $region63: #{tpu_custom_call.1} parent=59 // pred_region
          %s878 = sand.u32 %s133, 1
          %s879 = scalar_lea.sflag [#allocation5], %s878
          %s880 = sand.u32 %s133, 1
          %s881 = smul.addr %s880, 256
          %s882 = scalar_lea.vmem [#allocation9], %s881
          %884 = dma.done %s879, 4096
        $region64: #{tpu_custom_call.1} parent=59 // pred_fallthru
          _
      $region60: #{tpu_custom_call.1} parent=5 // pred_fallthru
        _
    $region6: #{tpu_custom_call.1} parent=1 // loop_footer
      %s20 = sadd.s32 1, %s16
    $region7: #{tpu_custom_call.1} parent=1 // loop_footer_branch
      %15 = sbr.rel target = $region3
    $region8: #{tpu_custom_call.1} parent=1 // loop_exit
      _
    %885 = vsyncpa [#allocation4], 1
    %s886 = scalar_lea.sflag [#allocation4], 1
    %887 = vsyncpa %s886, 1
    %888 = vsyncpa [#allocation7], 1
    %889 = vsyncpa [#allocation5], 1
    %s890 = scalar_lea.sflag [#allocation5], 1
    %891 = vsyncpa %s890, 1

</llo_original>
